<compile_context>
chip_gen: v7x
topology: tpu7x:2x2x1
jax: 0.10.0
libtpu: 0.0.40
codegen_flags: <defaults>
</compile_context>

<pallas_src>
import functools

import jax
import jax.numpy as jnp
from jax.experimental import pallas as pl
from jax.experimental.pallas import tpu as pltpu


# ----------------------------------------------------------------------------- helpers

def _round_up(n: int, m: int) -> int:
    return (n + m - 1) // m * m


def _vmem_capacity_bytes() -> int:
    """Physical VMEM per core; conservative 64 MiB fallback (v7x-sized)."""
    try:
        info = pltpu.get_tpu_info()
        cap = int(getattr(info, "vmem_capacity_bytes", 0) or 0)
        if cap > 0:
            return cap
    except Exception:
        pass
    return 64 << 20


def _vmem_budget_bytes() -> int:
    """Usable budget for this kernel: leave headroom for Mosaic internals."""
    cap = _vmem_capacity_bytes()
    return max(min(int(0.78 * cap), cap - (8 << 20)), 16 << 20)


def _num_tensorcores() -> int:
    try:
        info = pltpu.get_tpu_info()
        n = int(getattr(info, "num_cores", 0) or 0)
        if n > 0:
            return n
    except Exception:
        pass
    try:
        return max(1, int(getattr(jax.devices()[0], "num_cores", 1) or 1))
    except Exception:
        return 1


def _vmem_need_bytes(tile_m, tile_h, dim, bytes_x, bytes_w, bytes_out):
    """Double-buffered tiles + resident accumulator + f32 kernel intermediates."""
    return (
        2 * tile_m * dim * bytes_x            # x tiles
        + 2 * tile_m * dim * bytes_out        # out tiles
        + 2 * dim * 2 * tile_h * bytes_w      # fused w1/w3 tiles
        + 2 * tile_h * dim * bytes_w          # w2t tiles
        + tile_m * dim * 4                    # f32 accumulator (resident)
        + tile_m * 2 * tile_h * 4             # h13 (f32 MXU result)
        + tile_m * tile_h * (4 + bytes_w)     # gated f32 + its compute-dtype copy
    )


def _pick_tile_h(hidden: int, dim: int, bytes_w: int) -> int:
    budget = _vmem_budget_bytes()
    cap_h = 1024 if budget >= (80 << 20) else 512
    tile_h = min(cap_h, _round_up(hidden, 128))
    # Make sure at least a tile_m=256 M-tile can sit next to the weight tiles.
    while tile_h > 128 and _vmem_need_bytes(256, tile_h, dim, bytes_w, bytes_w, 4) > budget:
        tile_h -= 128
    return max(128, tile_h)


def _pick_tile_m(m: int, tile_h: int, dim: int, bytes_x: int, bytes_w: int,
                 bytes_out: int) -> int:
    budget = _vmem_budget_bytes()
    cap_m = 512 if budget >= (80 << 20) else 256      # big on v5e/v6e, lean on v7x
    if m >= 128:
        tile_m = min(cap_m, _round_up(m, 128))
        while tile_m > 128 and _vmem_need_bytes(tile_m, tile_h, dim, bytes_x,
                                                bytes_w, bytes_out) > budget:
            tile_m -= 128
    else:
        # >=16 rows so sub-32-bit activations satisfy the (16,128) min tile.
        tile_m = _round_up(max(m, 1), 16)
    return tile_m


# ----------------------------------------------------------------------------- packing

def pack_ffn_params(w1, w2, w3, *, tile_h=None, dtype=None):
    """One-time packing of PyTorch-layout FFN weights into the kernel layout.

    w1, w3: (hidden, dim)   nn.Linear weights (y = x @ W.T, no bias)
    w2:     (dim, hidden)

    Returns (w13, w2t, tile_h):
      w13: (dim, 2*hidden_p); per hidden tile h, columns
           [2*h*tile_h : 2*h*tile_h + tile_h]       = w1.T tile h
           [2*h*tile_h + tile_h : 2*(h+1)*tile_h]   = w3.T tile h
      w2t: (hidden_p, dim) = w2.T with zero-padded rows.
    Zero padding is exact: silu(0) * 0 == 0 contributes nothing to the output.
    Pack with dtype=jnp.bfloat16 for MXU peak on v6e/v7x.
    """
    hidden, dim = w1.shape
    if dtype is None:
        dtype = w1.dtype
    if tile_h is None:
        tile_h = _pick_tile_h(hidden, dim, jnp.dtype(dtype).itemsize)
    hidden_p = _round_up(hidden, tile_h)
    num_h = hidden_p // tile_h

    def pad_cols(wt):  # (dim, hidden) -> (dim, hidden_p)
        return jnp.pad(wt, ((0, 0), (0, hidden_p - hidden)))

    w1t = pad_cols(w1.T.astype(dtype))
    w3t = pad_cols(w3.T.astype(dtype))
    # Interleave per hidden tile so one (dim, 2*tile_h) block feeds both projections.
    w13 = jnp.concatenate(
        [w1t.reshape(dim, num_h, tile_h), w3t.reshape(dim, num_h, tile_h)],
        axis=-1,
    ).reshape(dim, 2 * hidden_p)

    w2t = jnp.pad(w2.T.astype(dtype), ((0, hidden_p - hidden), (0, 0)))
    return w13, w2t, tile_h


# ------------------------------------------------------------------------------ kernel

def _ffn_kernel(x_ref, w13_ref, w2t_ref, o_ref, acc_ref, *, h_axis):
    # x_ref:   (tile_m, dim)        already in compute dtype (cast once in wrapper)
    # w13_ref: (dim, 2*tile_h)      fused [w1.T tile | w3.T tile]
    # w2t_ref: (tile_h, dim)
    # o_ref:   (tile_m, dim)
    # acc_ref: (tile_m, dim) f32 scratch, resident across the hidden (reduction) axis
    h = pl.program_id(h_axis)

    @pl.when(h == 0)
    def _init():
        acc_ref[...] = jnp.zeros_like(acc_ref)

    tile_h = w2t_ref.shape[0]

    # One MXU matmul for both the gate (w1) and up (w3) projections.
    h13 = jnp.dot(x_ref[...], w13_ref[...], preferred_element_type=jnp.float32)
    h1 = h13[:, :tile_h]
    h3 = h13[:, tile_h:]
    gated = (h1 * jax.nn.sigmoid(h1)) * h3          # SwiGLU gate, f32 on VPU/EUP

    acc_ref[...] += jnp.dot(gated.astype(w2t_ref.dtype), w2t_ref[...],
                            preferred_element_type=jnp.float32)

    @pl.when(h == pl.num_programs(h_axis) - 1)
    def _finalize():
        o_ref[...] = acc_ref[...].astype(o_ref.dtype)
    # TODO(synk): training-mode dropout (PRNG mask) not implemented; eval mode is identity.


# ----------------------------------------------------------------------------- wrapper

def feed_forward(x, w13, w2t, tile_h, *, tile_m=None, out_dtype=None, split_hidden=None):
    """x: (..., dim); (w13, w2t, tile_h) from pack_ffn_params.  Returns (..., dim)."""
    orig_shape = x.shape
    dim = orig_shape[-1]
    hidden_p = w2t.shape[0]
    assert w13.shape == (dim, 2 * hidden_p)
    assert hidden_p % tile_h == 0
    num_h = hidden_p // tile_h

    compute_dtype = w13.dtype
    if out_dtype is None:
        out_dtype = x.dtype            # module-equivalent; pass bf16 to halve out DMA

    bytes_x = jnp.dtype(compute_dtype).itemsize
    bytes_w = jnp.dtype(w13.dtype).itemsize
    bytes_out = jnp.dtype(out_dtype).itemsize

    # Cast once here (not per hidden step in the kernel) — halves x DMA for bf16 packing.
    x2d = x.reshape(-1, dim).astype(compute_dtype)
    m = x2d.shape[0]

    if tile_m is None:
        tile_m = _pick_tile_m(m, tile_h, dim, bytes_x, bytes_w, bytes_out)
    m_p = _round_up(m, tile_m)
    if m_p != m:
        x2d = jnp.pad(x2d, ((0, m_p - m), (0, 0)))
    num_m = m_p // tile_m

    # v7x decode path: when M is a single tile, split the hidden reduction across the
    # two TensorCores (otherwise the second core would be idle).
    if split_hidden is None:
        split_hidden = (num_m == 1 and num_h >= 2 and num_h % 2 == 0
                        and _num_tensorcores() >= 2)
    split_hidden = bool(split_hidden) and num_h >= 2 and num_h % 2 == 0

    cap = _vmem_capacity_bytes()
    vmem_need = _vmem_need_bytes(tile_m, tile_h, dim, bytes_x, bytes_w, bytes_out)
    vmem_limit = min(max(int(1.25 * vmem_need) + (4 << 20), 16 << 20), cap - (4 << 20))

    cost = pl.CostEstimate(
        flops=6 * m_p * dim * hidden_p,
        transcendentals=m_p * hidden_p,
        bytes_accessed=int(
            m_p * dim * (bytes_x + bytes_out)                 # x + out
            + num_m * (w13.size + w2t.size) * bytes_w         # weights streamed per M tile
        ),
    )

    if not split_hidden:
        out = pl.pallas_call(
            functools.partial(_ffn_kernel, h_axis=1),
            out_shape=jax.ShapeDtypeStruct((m_p, dim), out_dtype),
            grid_spec=pltpu.PrefetchScalarGridSpec(
                num_scalar_prefetch=0,
                grid=(num_m, num_h),
                in_specs=[
                    pl.BlockSpec((tile_m, dim), lambda i, j: (i, 0)),
                    pl.BlockSpec((dim, 2 * tile_h), lambda i, j: (0, j)),
                    pl.BlockSpec((tile_h, dim), lambda i, j: (j, 0)),
                ],
                out_specs=pl.BlockSpec((tile_m, dim), lambda i, j: (i, 0)),
                scratch_shapes=[pltpu.VMEM((tile_m, dim), jnp.float32)],
            ),
            compiler_params=pltpu.CompilerParams(
                dimension_semantics=("parallel", "arbitrary"),
                vmem_limit_bytes=vmem_limit,
            ),
            cost_estimate=cost,
        )(x2d, w13, w2t)
    else:
        num_h_half = num_h // 2
        partial = pl.pallas_call(
            functools.partial(_ffn_kernel, h_axis=2),
            out_shape=jax.ShapeDtypeStruct((2, m_p, dim), jnp.float32),
            grid_spec=pltpu.PrefetchScalarGridSpec(
                num_scalar_prefetch=0,
                grid=(2, num_m, num_h_half),
                in_specs=[
                    pl.BlockSpec((tile_m, dim), lambda c, i, j: (i, 0)),
                    pl.BlockSpec((dim, 2 * tile_h),
                                 lambda c, i, j: (0, c * num_h_half + j)),
                    pl.BlockSpec((tile_h, dim),
                                 lambda c, i, j: (c * num_h_half + j, 0)),
                ],
                out_specs=pl.BlockSpec((pl.Squeezed(), tile_m, dim),
                                       lambda c, i, j: (c, i, 0)),
                scratch_shapes=[pltpu.VMEM((tile_m, dim), jnp.float32)],
            ),
            compiler_params=pltpu.CompilerParams(
                dimension_semantics=("parallel", "parallel", "arbitrary"),
                vmem_limit_bytes=vmem_limit,
            ),
            cost_estimate=cost,
        )(x2d, w13, w2t)
        out = partial.sum(axis=0).astype(out_dtype)

    if m_p != m:
        out = out[:m]
    return out.reshape(orig_shape[:-1] + (dim,))


# ------------------------------------------------------------------------------- tests

def _reference(x, w1, w2, w3):
    h1 = x @ w1.T
    h3 = x @ w3.T
    return (h1 * jax.nn.sigmoid(h1) * h3) @ w2.T


def _make_case(key, dim, batch, seq, hidden_dim_multiplier=1, multiple_of=32):
    # Mirrors the PyTorch __init__ hidden-dim math (hidden_dim arg = 4*dim).
    hidden = int(2 * hidden_dim_multiplier * (4 * dim) / 3)
    hidden = multiple_of * ((hidden + multiple_of - 1) // multiple_of)
    kx, k1, k2, k3 = jax.random.split(key, 4)
    x = jax.random.normal(kx, (batch, seq, dim), dtype=jnp.float32)
    w1 = jax.random.normal(k1, (hidden, dim), dtype=jnp.float32) * (1.0 / dim ** 0.5)
    w2 = jax.random.normal(k2, (dim, hidden), dtype=jnp.float32) * (1.0 / hidden ** 0.5)
    w3 = jax.random.normal(k3, (hidden, dim), dtype=jnp.float32) * (1.0 / dim ** 0.5)
    return x, w1, w2, w3


if __name__ == "__main__":
    key = jax.random.PRNGKey(0)
    k_small, k_tiled, k_split = jax.random.split(key, 3)

    # Case 1: module-consistent toy shapes (dim=32 -> hidden=96), single tile per axis.
    x, w1, w2, w3 = _make_case(k_small, dim=32, batch=2, seq=8)
    w13, w2t, th = pack_ffn_params(w1, w2, w3)
    out = jax.block_until_ready(feed_forward(x, w13, w2t, th))
    ref = _reference(x, w1, w2, w3)
    assert out.shape == x.shape
    assert jnp.allclose(out, ref, atol=1e-3, rtol=1e-3), "mismatch vs reference (case 1)"

    # Case 2: tiled / accumulating path (multiple hidden tiles), auto tile_m.
    x2, w1b, w2b, w3b = _make_case(k_tiled, dim=128, batch=4, seq=128)  # hidden=352
    w13b, w2tb, thb = pack_ffn_params(w1b, w2b, w3b, tile_h=128)
    out2 = jax.block_until_ready(feed_forward(x2, w13b, w2tb, thb))
    ref2 = _reference(x2, w1b, w2b, w3b)
    assert out2.shape == x2.shape
    assert jnp.allclose(out2, ref2, atol=1e-3, rtol=1e-3), "mismatch vs reference (case 2)"

    # Case 3: forced hidden-split (v7x decode) path — leading parallel axis + XLA sum.
    x3, w1c, w2c, w3c = _make_case(k_split, dim=96, batch=2, seq=8)     # hidden=256
    w13c, w2tc, thc = pack_ffn_params(w1c, w2c, w3c, tile_h=128)
    out3 = jax.block_until_ready(feed_forward(x3, w13c, w2tc, thc, split_hidden=True))
    ref3 = _reference(x3, w1c, w2c, w3c)
    assert out3.shape == x3.shape
    assert jnp.allclose(out3, ref3, atol=1e-3, rtol=1e-3), "mismatch vs reference (case 3)"

    # Case 4: bf16-packed weights (recommended on v6e/v7x) — looser tolerance vs f32 ref.
    w13d, w2td, thd = pack_ffn_params(w1b, w2b, w3b, dtype=jnp.bfloat16)
    out4 = jax.block_until_ready(feed_forward(x2, w13d, w2td, thd))
    assert out4.shape == x2.shape
    assert jnp.allclose(out4, ref2, atol=5e-2, rtol=5e-2), "mismatch vs reference (case 4, bf16)"

    print("KERNEL_OK")
</pallas_src>

<mosaic_0001>
module attributes {stable_mosaic.version = 11 : i64} {
  func.func @_ffn_kernel(%arg0: i32, %arg1: i32, %arg2: memref<16x32xf32, #tpu.memory_space<vmem>>, %arg3: memref<32x256xf32, #tpu.memory_space<vmem>>, %arg4: memref<128x32xf32, #tpu.memory_space<vmem>>, %arg5: memref<16x32xf32, #tpu.memory_space<vmem>>, %arg6: memref<16x32xf32, #tpu.memory_space<vmem>>) attributes {dimension_semantics = [#tpu.dimension_semantics<parallel>, #tpu.dimension_semantics<arbitrary>], iteration_bounds = array<i64: 1, 1>, scalar_prefetch = 0 : i64, scratch_operands = 1 : i64, tpu.core_type = #tpu.core_type<tc>, window_params = [{transform_indices = @transform_0, window_bounds = array<i64: 16, 32>}, {transform_indices = @transform_1, window_bounds = array<i64: 32, 256>}, {transform_indices = @transform_2, window_bounds = array<i64: 128, 32>}, {transform_indices = @transform_3, window_bounds = array<i64: 16, 32>}]} {
    %c0_i32 = arith.constant 0 : i32
    %0 = arith.cmpi eq, %arg1, %c0_i32 : i32
    %1 = arith.extui %0 : i1 to i32
    %c0_i32_0 = arith.constant 0 : i32
    %2 = arith.cmpi ne, %1, %c0_i32_0 : i32
    scf.if %2 {
      %cst_14 = arith.constant 0.000000e+00 : f32
      %23 = vector.broadcast %cst_14 : f32 to vector<16x32xf32>
      %c0_15 = arith.constant 0 : index
      %c0_16 = arith.constant 0 : index
      %24 = vector.load %arg6[%c0_15, %c0_16] : memref<16x32xf32, #tpu.memory_space<vmem>>, vector<16x32xf32>
      tpu.vector_store %arg6[%c0_15, %c0_16], %23 {strides = array<i32>} : memref<16x32xf32, #tpu.memory_space<vmem>>, vector<16x32xf32>,
    } else {
    }
    %c0 = arith.constant 0 : index
    %c0_1 = arith.constant 0 : index
    %3 = vector.load %arg2[%c0, %c0_1] : memref<16x32xf32, #tpu.memory_space<vmem>>, vector<16x32xf32>
    %c0_2 = arith.constant 0 : index
    %c0_3 = arith.constant 0 : index
    %4 = vector.load %arg3[%c0_2, %c0_3] : memref<32x256xf32, #tpu.memory_space<vmem>>, vector<32x256xf32>
    %cst = arith.constant dense<0.000000e+00> : vector<16x256xf32>
    %5 = tpu.matmul %3, %4, %cst {dimension_numbers = #tpu.dot_dimension_numbers<[1], [0], [0], [1], [0, 0, 1, 1], [], []>} : vector<16x32xf32>, vector<32x256xf32>, vector<16x256xf32> -> vector<16x256xf32>
    %6 = vector.extract_strided_slice %5 {offsets = [0, 0], sizes = [16, 128], strides = [1, 1]} : vector<16x256xf32> to vector<16x128xf32>
    %7 = vector.extract_strided_slice %5 {offsets = [0, 128], sizes = [16, 128], strides = [1, 1]} : vector<16x256xf32> to vector<16x128xf32>
    %8 = arith.negf %6 : vector<16x128xf32>
    %9 = math.exp %8 : vector<16x128xf32>
    %cst_4 = arith.constant 1.000000e+00 : f32
    %10 = vector.broadcast %cst_4 : f32 to vector<16x128xf32>
    %11 = arith.addf %10, %9 : vector<16x128xf32>
    %12 = arith.divf %10, %11 : vector<16x128xf32>
    %13 = arith.mulf %6, %12 : vector<16x128xf32>
    %14 = arith.mulf %13, %7 : vector<16x128xf32>
    %c0_5 = arith.constant 0 : index
    %c0_6 = arith.constant 0 : index
    %15 = vector.load %arg6[%c0_5, %c0_6] : memref<16x32xf32, #tpu.memory_space<vmem>>, vector<16x32xf32>
    %c0_7 = arith.constant 0 : index
    %c0_8 = arith.constant 0 : index
    %16 = vector.load %arg4[%c0_7, %c0_8] : memref<128x32xf32, #tpu.memory_space<vmem>>, vector<128x32xf32>
    %cst_9 = arith.constant dense<0.000000e+00> : vector<16x32xf32>
    %17 = tpu.matmul %14, %16, %cst_9 {dimension_numbers = #tpu.dot_dimension_numbers<[1], [0], [0], [1], [0, 0, 1, 1], [], []>} : vector<16x128xf32>, vector<128x32xf32>, vector<16x32xf32> -> vector<16x32xf32>
    %18 = arith.addf %15, %17 : vector<16x32xf32>
    %c0_10 = arith.constant 0 : index
    %c0_11 = arith.constant 0 : index
    %19 = vector.load %arg6[%c0_10, %c0_11] : memref<16x32xf32, #tpu.memory_space<vmem>>, vector<16x32xf32>
    tpu.vector_store %arg6[%c0_10, %c0_11], %18 {strides = array<i32>} : memref<16x32xf32, #tpu.memory_space<vmem>>, vector<16x32xf32>,
    %c0_i32_12 = arith.constant 0 : i32
    %20 = arith.cmpi eq, %arg1, %c0_i32_12 : i32
    %21 = arith.extui %20 : i1 to i32
    %c0_i32_13 = arith.constant 0 : i32
    %22 = arith.cmpi ne, %21, %c0_i32_13 : i32
    scf.if %22 {
      %c0_14 = arith.constant 0 : index
      %c0_15 = arith.constant 0 : index
      %23 = vector.load %arg6[%c0_14, %c0_15] : memref<16x32xf32, #tpu.memory_space<vmem>>, vector<16x32xf32>
      %c0_16 = arith.constant 0 : index
      %c0_17 = arith.constant 0 : index
      %24 = vector.load %arg5[%c0_16, %c0_17] : memref<16x32xf32, #tpu.memory_space<vmem>>, vector<16x32xf32>
      tpu.vector_store %arg5[%c0_16, %c0_17], %23 {strides = array<i32>} : memref<16x32xf32, #tpu.memory_space<vmem>>, vector<16x32xf32>,
    } else {
    }
    return
  }
  func.func @transform_0(%arg0: i32, %arg1: i32) -> (i32, i32) {
    %c0_i32 = arith.constant 0 : i32
    %c0_i32_0 = arith.constant 0 : i32
    return %arg0, %c0_i32 : i32, i32
  }
  func.func @transform_1(%arg0: i32, %arg1: i32) -> (i32, i32) {
    %c0_i32 = arith.constant 0 : i32
    %c0_i32_0 = arith.constant 0 : i32
    return %c0_i32, %arg1 : i32, i32
  }
  func.func @transform_2(%arg0: i32, %arg1: i32) -> (i32, i32) {
    %c0_i32 = arith.constant 0 : i32
    %c0_i32_0 = arith.constant 0 : i32
    return %arg1, %c0_i32 : i32, i32
  }
  func.func @transform_3(%arg0: i32, %arg1: i32) -> (i32, i32) {
    %c0_i32 = arith.constant 0 : i32
    %c0_i32_0 = arith.constant 0 : i32
    return %arg0, %c0_i32 : i32, i32
  }
}

</mosaic_0001>

<llo_original>
// kernel: tpu_custom_call.1
$region0: #{tpu_custom_call.1}
  #allocation0 [shape = 'u32[]', space=smem, size = 0x4, offset = 0x4, fixed_abs, tag = 'smem constant byte address 0x4 - core index']
  #allocation1 [shape = 'u32[144,128]{1,0:T(1,128)}', space=vmem, size = 0x12000, scoped, tag = 'internal scratch']
  #allocation2 [shape = 'f32[16,32]{1,0:T(8,128)}', space=vmem, size = 0x2000, scoped, tag = 'scratch operand']
  %s0 = inlined_call_operand.vmem [shape: f32[16,32], index: 0, kind: input, shape index: {}]
  %s1 = inlined_call_operand.vmem [shape: f32[32,256], index: 1, kind: input, shape index: {}]
  %s2 = inlined_call_operand.vmem [shape: f32[128,32], index: 2, kind: input, shape index: {}]
  %s3 = inlined_call_operand.hbm [shape: f32[16,32], index: 3, kind: output, shape index: {}]
  %s4 = sld [smem:[#allocation0]]
  $region30: #{tpu_custom_call.1} parent=0
    _
  %s6 = ssub.s32 1, %s4
  %s7 = scalar_select 0, %s6, %s4
  $region1: #{tpu_custom_call.1} parent=0
    #allocation3 [shape = 'u8[8192]{0}', space=vmem, size = 0x2000, scoped, tag = 'output window, operand 0, single buffered']
    #allocation4 [shape = 's32[1]{0}', space=sflag, size = 0x4, scoped, tag = 'scoped memory for tpu_custom_call.1']
    %8 = vsyncpa [#allocation4], 0
    // Predicated region
    $region2: #{tpu_custom_call.1} parent=1 // pred_check
      _
    $region3: #{tpu_custom_call.1} parent=1 // pred_check_branch
      %10 = sbr.rel (0) target = $region5
    $region4: #{tpu_custom_call.1} parent=1 // pred_region
      _
    $region5: #{tpu_custom_call.1} parent=1 // pred_fallthru
      _
    // Predicated region
    $region6: #{tpu_custom_call.1} parent=1 // pred_check
      _
    $region7: #{tpu_custom_call.1} parent=1 // pred_check_branch
      %12 = sbr.rel (0) target = $region9
    $region8: #{tpu_custom_call.1} parent=1 // pred_region
      _
    $region9: #{tpu_custom_call.1} parent=1 // pred_fallthru
      _
    // Predicated region
    $region10: #{tpu_custom_call.1} parent=1 // pred_check
      _
    $region11: #{tpu_custom_call.1} parent=1 // pred_check_branch
      %14 = sbr.rel (0) target = $region13
    $region12: #{tpu_custom_call.1} parent=1 // pred_region
      _
    $region13: #{tpu_custom_call.1} parent=1 // pred_fallthru
      _
    %p15 = scmp.eq.s32.totalorder 0, 0
    // Predicated region
    $region14: #{tpu_custom_call.1} parent=1 // pred_check
      %p16 = pneg %p15
    $region15: #{tpu_custom_call.1} parent=1 // pred_check_branch
      %18 = sbr.rel (%p16) target = $region17
    $region16: #{tpu_custom_call.1} parent=1 // pred_region
      %vm19 = vcmask 261120
      %20 = vst.msk [vmem:[#allocation2] sm:$0xff] %vm19, 0.0
      %21 = vst.msk [vmem:[#allocation2 + $0x8] sm:$0xff] %vm19, 0.0
    $region17: #{tpu_custom_call.1} parent=1 // pred_fallthru
      _
    %v22 = vld [vmem:[%s0] sm:$0xff]
    %v23 = vld [vmem:[%s0 + $0x8] sm:$0xff]
    %v24 = vld [vmem:[%s1] sm:$0xff]
    %v25 = vld [vmem:[%s1 + $0x8] sm:$0xff]
    %v26 = vld [vmem:[%s1 + $0x10] sm:$0xff]
    %v27 = vld [vmem:[%s1 + $0x18] sm:$0xff]
    %v28 = vld [vmem:[%s1 + $0x20] sm:$0xff]
    %v29 = vld [vmem:[%s1 + $0x28] sm:$0xff]
    %v30 = vld [vmem:[%s1 + $0x30] sm:$0xff]
    %v31 = vld [vmem:[%s1 + $0x38] sm:$0xff]
    %vm32 = vcmask 261120
    %v34 = vsel %vm32, %v22, 0
    %v37 = vsel %vm32, %v23, 0
    %39 = vmatprep.subr.mxu0 %v25
    %40 = vmatpush1.msra.mxu0 %v24
    %41 = vmatprep.subr.mxu0 %v27
    %42 = vmatpush1.msra.mxu0 %v26
    %43 = vmatprep.subr.mxu0 %v29
    %44 = vmatpush1.msra.mxu0 %v28
    %45 = vmatprep.subr.mxu0 %v31
    %46 = vmatpush1.msra.mxu0 %v30
    %47 = vmatprep.subr.mxu0 0.0
    %48 = vmatpush1.msra.mxu0 0.0
    %49 = vmatprep.subr.mxu0 0.0
    %50 = vmatpush1.msra.mxu0 0.0
    %51 = vmatprep.subr.mxu0 0.0
    %52 = vmatpush1.msra.mxu0 0.0
    %53 = vmatprep.subr.mxu0 0.0
    %54 = vmatpush1.msra.mxu0 0.0
    %55 = vmatprep.subr.mxu0 0.0
    %56 = vmatpush1.msra.mxu0 0.0
    %57 = vmatprep.subr.mxu0 0.0
    %58 = vmatpush1.msra.mxu0 0.0
    %59 = vmatprep.subr.mxu0 0.0
    %60 = vmatpush1.msra.mxu0 0.0
    %61 = vmatprep.subr.mxu0 0.0
    %62 = vmatpush1.msra.mxu0 0.0
    %63 = vmatprep.subr.mxu0 0.0
    %64 = vmatpush1.msra.mxu0 0.0
    %65 = vmatprep.subr.mxu0 0.0
    %66 = vmatpush1.msra.mxu0 0.0
    %67 = vmatprep.subr.mxu0 0.0
    %68 = vmatpush1.msra.mxu0 0.0
    %69 = vmatprep.subr.mxu0 0.0
    %70 = vmatpush1.msra.mxu0 0.0
    %71 = vmatprep.subr.mxu0 0.0
    %72 = vmatpush1.msra.mxu0 0.0
    %73 = vmatprep.subr.mxu0 0.0
    %74 = vmatpush1.msra.mxu0 0.0
    %75 = vmatprep.subr.mxu0 0.0
    %76 = vmatpush1.msra.mxu0 0.0
    %77 = vmatprep.subr.mxu0 0.0
    %78 = vmatpush1.msra.mxu0 0.0
    %79 = vmatprep.subr.mxu0 0.0
    %80 = vmatpush1.msra.mxu0 0.0
    %81 = vmatprep.subr.mxu0 0.0
    %82 = vmatpush1.msra.mxu0 0.0
    %83 = vmatprep.subr.mxu0 0.0
    %84 = vmatpush1.msra.mxu0 0.0
    %85 = vmatprep.subr.mxu0 0.0
    %86 = vmatpush1.msra.mxu0 0.0
    %87 = vmatprep.subr.mxu0 0.0
    %88 = vmatpush1.msra.mxu0 0.0
    %89 = vmatprep.subr.mxu0 0.0
    %90 = vmatpush1.msra.mxu0 0.0
    %91 = vmatprep.subr.mxu0 0.0
    %92 = vmatpush1.msra.mxu0 0.0
    %93 = vmatprep.subr.mxu0 0.0
    %94 = vmatpush1.msra.mxu0 0.0
    %95 = vmatprep.subr.mxu0 0.0
    %96 = vmatpush1.msra.mxu0 0.0
    %97 = vmatprep.subr.mxu0 0.0
    %98 = vmatpush1.msra.mxu0 0.0
    %99 = vmatprep.subr.mxu0 0.0
    %100 = vmatpush1.msra.mxu0 0.0
    %101 = vmatprep.subr.mxu0 0.0
    %102 = vmatpush1.msra.mxu0 0.0
    %103 = vmatprep.mubr.f32.mxu0 0.0
    %104 = vmatmul.mubr.f32.gmra.mrb[0].mxu0 %v34
    %v105 = vpop.f32.mrb[0].mxu0
    %v106 = vadd.f32 0.0, %v105
    %v107 = vpop.f32.mrb[0].mxu0
    %v108 = vadd.f32 0.0, %v107
    %109 = vmatprep.mubr.f32.mxu0 0.0
    %110 = vmatmul.mubr.f32.gmra.mrb[0].mxu0 %v37
    %v111 = vpop.f32.mrb[0].mxu0
    %v112 = vadd.f32 0.0, %v111
    %v113 = vpop.f32.mrb[0].mxu0
    %v114 = vadd.f32 0.0, %v113
    %115 = vdwg.mxu0
    %v116 = vxor.u32 %v106, 2147483648
    %v117 = vxor.u32 %v112, 2147483648
    %v118 = vmul.f32 %v116, 1.442695
    %v119 = vpow.pop %v118
    %v120 = vmul.f32 %v117, 1.442695
    %v121 = vpow.pop %v120
    %v122 = vadd.f32 %v119, 1.0
    %v123 = vadd.f32 %v121, 1.0
    %v124 = vrcp.pop %v122
    %v125 = vmul.f32 1.0, %v124
    %v126 = vrcp.pop %v123
    %v127 = vmul.f32 1.0, %v126
    %v128 = vmul.f32 %v106, %v125
    %v129 = vmul.f32 %v112, %v127
    %v130 = vmul.f32 %v128, %v108
    %v131 = vmul.f32 %v129, %v114
    %v132 = vld [vmem:[#allocation2] sm:$0xff]
    %v133 = vld [vmem:[#allocation2 + $0x8] sm:$0xff]
    %v134 = vld [vmem:[%s2] sm:$0xff]
    %v135 = vld [vmem:[%s2 + $0x8] sm:$0xff]
    %v136 = vld [vmem:[%s2 + $0x10] sm:$0xff]
    %v137 = vld [vmem:[%s2 + $0x18] sm:$0xff]
    %v138 = vld [vmem:[%s2 + $0x20] sm:$0xff]
    %v139 = vld [vmem:[%s2 + $0x28] sm:$0xff]
    %v140 = vld [vmem:[%s2 + $0x30] sm:$0xff]
    %v141 = vld [vmem:[%s2 + $0x38] sm:$0xff]
    %v142 = vld [vmem:[%s2 + $0x40] sm:$0xff]
    %v143 = vld [vmem:[%s2 + $0x48] sm:$0xff]
    %v144 = vld [vmem:[%s2 + $0x50] sm:$0xff]
    %v145 = vld [vmem:[%s2 + $0x58] sm:$0xff]
    %v146 = vld [vmem:[%s2 + $0x60] sm:$0xff]
    %v147 = vld [vmem:[%s2 + $0x68] sm:$0xff]
    %v148 = vld [vmem:[%s2 + $0x70] sm:$0xff]
    %v149 = vld [vmem:[%s2 + $0x78] sm:$0xff]
    %150 = vmatprep.subr.mxu0 0.0
    %151 = vmatpush1.msra.mxu0 %v134
    %152 = vmatprep.subr.mxu0 0.0
    %153 = vmatpush1.msra.mxu0 %v135
    %154 = vmatprep.subr.mxu0 0.0
    %155 = vmatpush1.msra.mxu0 %v136
    %156 = vmatprep.subr.mxu0 0.0
    %157 = vmatpush1.msra.mxu0 %v137
    %158 = vmatprep.subr.mxu0 0.0
    %159 = vmatpush1.msra.mxu0 %v138
    %160 = vmatprep.subr.mxu0 0.0
    %161 = vmatpush1.msra.mxu0 %v139
    %162 = vmatprep.subr.mxu0 0.0
    %163 = vmatpush1.msra.mxu0 %v140
    %164 = vmatprep.subr.mxu0 0.0
    %165 = vmatpush1.msra.mxu0 %v141
    %166 = vmatprep.subr.mxu0 0.0
    %167 = vmatpush1.msra.mxu0 %v142
    %168 = vmatprep.subr.mxu0 0.0
    %169 = vmatpush1.msra.mxu0 %v143
    %170 = vmatprep.subr.mxu0 0.0
    %171 = vmatpush1.msra.mxu0 %v144
    %172 = vmatprep.subr.mxu0 0.0
    %173 = vmatpush1.msra.mxu0 %v145
    %174 = vmatprep.subr.mxu0 0.0
    %175 = vmatpush1.msra.mxu0 %v146
    %176 = vmatprep.subr.mxu0 0.0
    %177 = vmatpush1.msra.mxu0 %v147
    %178 = vmatprep.subr.mxu0 0.0
    %179 = vmatpush1.msra.mxu0 %v148
    %180 = vmatprep.subr.mxu0 0.0
    %181 = vmatpush1.msra.mxu0 %v149
    %182 = vmatprep.subr.mxu0 0.0
    %183 = vmatpush1.msra.mxu0 0.0
    %184 = vmatprep.subr.mxu0 0.0
    %185 = vmatpush1.msra.mxu0 0.0
    %186 = vmatprep.subr.mxu0 0.0
    %187 = vmatpush1.msra.mxu0 0.0
    %188 = vmatprep.subr.mxu0 0.0
    %189 = vmatpush1.msra.mxu0 0.0
    %190 = vmatprep.subr.mxu0 0.0
    %191 = vmatpush1.msra.mxu0 0.0
    %192 = vmatprep.subr.mxu0 0.0
    %193 = vmatpush1.msra.mxu0 0.0
    %194 = vmatprep.subr.mxu0 0.0
    %195 = vmatpush1.msra.mxu0 0.0
    %196 = vmatprep.subr.mxu0 0.0
    %197 = vmatpush1.msra.mxu0 0.0
    %198 = vmatprep.subr.mxu0 0.0
    %199 = vmatpush1.msra.mxu0 0.0
    %200 = vmatprep.subr.mxu0 0.0
    %201 = vmatpush1.msra.mxu0 0.0
    %202 = vmatprep.subr.mxu0 0.0
    %203 = vmatpush1.msra.mxu0 0.0
    %204 = vmatprep.subr.mxu0 0.0
    %205 = vmatpush1.msra.mxu0 0.0
    %206 = vmatprep.subr.mxu0 0.0
    %207 = vmatpush1.msra.mxu0 0.0
    %208 = vmatprep.subr.mxu0 0.0
    %209 = vmatpush1.msra.mxu0 0.0
    %210 = vmatprep.subr.mxu0 0.0
    %211 = vmatpush1.msra.mxu0 0.0
    %212 = vmatprep.subr.mxu0 0.0
    %213 = vmatpush1.msra.mxu0 0.0
    %214 = vmatprep.mubr.f32.mxu0 0.0
    %215 = vmatmul.mubr.f32.gmra.mrb[0].mxu0 %v130
    %v216 = vpop.f32.mrb[0].mxu0
    %v217 = vadd.f32 0.0, %v216
    %v218 = vpop.f32.mrb[0].mxu0
    %219 = vmatprep.mubr.f32.mxu0 0.0
    %220 = vmatmul.mubr.f32.gmra.mrb[0].mxu0 %v131
    %v221 = vpop.f32.mrb[0].mxu0
    %v222 = vadd.f32 0.0, %v221
    %v223 = vpop.f32.mrb[0].mxu0
    %224 = vdwg.mxu0
    %v225 = vadd.f32 %v132, %v217
    %v226 = vadd.f32 %v133, %v222
    %227 = vst.msk [vmem:[#allocation2] sm:$0xff] %vm32, %v225
    %228 = vst.msk [vmem:[#allocation2 + $0x8] sm:$0xff] %vm32, %v226
    // Predicated region
    $region18: #{tpu_custom_call.1} parent=1 // pred_check
      %p229 = pneg %p15
    $region19: #{tpu_custom_call.1} parent=1 // pred_check_branch
      %231 = sbr.rel (%p229) target = $region21
    $region20: #{tpu_custom_call.1} parent=1 // pred_region
      %v232 = vld [vmem:[#allocation2] sm:$0xff]
      %v233 = vld [vmem:[#allocation2 + $0x8] sm:$0xff]
      %234 = vst.msk [vmem:[#allocation3] sm:$0xff] %vm32, %v232
      %235 = vst.msk [vmem:[#allocation3 + $0x8] sm:$0xff] %vm32, %v233
    $region21: #{tpu_custom_call.1} parent=1 // pred_fallthru
      _
    // Predicated region
    $region22: #{tpu_custom_call.1} parent=1 // pred_check
      _
    $region23: #{tpu_custom_call.1} parent=1 // pred_check_branch
      %237 = sbr.rel (0) target = $region25
    $region24: #{tpu_custom_call.1} parent=1 // pred_region
      %s239 = ssub.s32 256, 256
      %240 = vsyncadd [#allocation4], %s239
      %s241 = sshll.u32 [#allocation3], 4
      %s242 = int_to_ptr.vmem [resolvable:$true] %s241
      %247 = dma.vmem_to_hbm [thread:$0]  %s242, 256, %s3, [#allocation4], 128, 128, 8
    $region25: #{tpu_custom_call.1} parent=1 // pred_fallthru
      _
    // Predicated region
    $region26: #{tpu_custom_call.1} parent=1 // pred_check
      _
    $region27: #{tpu_custom_call.1} parent=1 // pred_check_branch
      %249 = sbr.rel (0) target = $region29
    $region28: #{tpu_custom_call.1} parent=1 // pred_region
      %250 = dma.done [#allocation4], 256
    $region29: #{tpu_custom_call.1} parent=1 // pred_fallthru
      _
    %251 = vsyncpa [#allocation4], 1

</llo_original>
